<compile_context>
chip_gen: v6e
topology: v6e:2x2x1
jax: 0.10.0
libtpu: 0.0.40
codegen_flags: <defaults>
</compile_context>

<pallas_src>
import jax
import jax.numpy as jnp
from jax.experimental import pallas as pl
from jax.experimental.pallas import tpu as pltpu


def _round_up(x, m):
    return ((x + m - 1) // m) * m


def _mlb_fusion_kernel(x_ref, w_ref, o_ref):
    """Fused block-diagonal matmul + tanh + gated multiply for one row tile.

    x_ref: (tm, K_pad)       packed rows [v | q | 1 | 0-pad]
    w_ref: (K_pad, 2*dim_h)  packed [[Wv, 0], [0, Wq], [bv, bq], [0, 0]]
    o_ref: (tm, dim_h)
    """
    dim_h = o_ref.shape[-1]
    # One MXU matmul covers both linear layers; biases ride the ones column.
    z = jnp.dot(x_ref[...], w_ref[...], preferred_element_type=jnp.float32)
    t = jnp.tanh(z)  # single lane-dense (tm, 2*dim_h) EUP pass
    # Swap the xv / xq halves with an XLU lane rotate, multiply on the VPU.
    prod = t * pltpu.roll(t, shift=dim_h, axis=1)
    o_ref[...] = prod[:, :dim_h].astype(o_ref.dtype)


def mlb_fusion_2d(input_v, input_q, w_v, b_v, w_q, b_q, *, tm=2048,
                  io_dtype=None):
    """MLBFusion2d forward.

    input_v: (B, W, dim_v), input_q: (B, W, dim_q)
    w_v: (dim_v, dim_h)  [nn.Linear weight pre-transposed], b_v: (dim_h,)
    w_q: (dim_q, dim_h), b_q: (dim_h,)
    tm: row tile (rows of B*W processed per grid step); sweep 512..4096.
    io_dtype: optional dtype (e.g. jnp.bfloat16) for the streamed activations /
      weights; matmul accumulation and tanh/multiply stay in f32.
    Returns (B, W, dim_h) in input_v.dtype.
    """
    if input_v.ndim != 3 or input_q.ndim != 3:
        raise ValueError("expected (batch, weight_height, dim) inputs")
    B, W, dim_v = input_v.shape
    Bq, Wq, dim_q = input_q.shape
    if (B, W) != (Bq, Wq):
        raise ValueError("batch/weight_height mismatch between input_v and input_q")
    dim_h = w_v.shape[1]
    assert w_q.shape == (dim_q, dim_h)

    out_dtype = input_v.dtype
    stream_dtype = out_dtype if io_dtype is None else io_dtype

    N = B * W
    K = dim_v + dim_q + 1                 # +1 ones column folds both biases in
    K_pad = _round_up(K, 8)

    # Row tile: as large as requested but never larger than (padded) N; keep it
    # a multiple of 16 so both f32 and bf16 blocks satisfy TPU tiling rules.
    tm_eff = _round_up(max(16, min(tm, _round_up(N, 16))), 16)
    N_pad = _round_up(N, tm_eff)

    # ---- wrapper-side input packing: [v | q | 1], pad N and K with zeros ----
    x = jnp.concatenate(
        [input_v.reshape(N, dim_v).astype(jnp.float32),
         input_q.reshape(N, dim_q).astype(jnp.float32),
         jnp.ones((N, 1), jnp.float32)],
        axis=1)
    x = jnp.pad(x, ((0, N_pad - N), (0, K_pad - K))).astype(stream_dtype)

    # ---- wrapper-side weight packing: block-diagonal + bias row -------------
    w = jnp.zeros((K_pad, 2 * dim_h), jnp.float32)
    w = w.at[:dim_v, :dim_h].set(w_v.astype(jnp.float32))
    w = w.at[dim_v:dim_v + dim_q, dim_h:].set(w_q.astype(jnp.float32))
    w = w.at[dim_v + dim_q, :dim_h].set(b_v.astype(jnp.float32))
    w = w.at[dim_v + dim_q, dim_h:].set(b_q.astype(jnp.float32))
    w = w.astype(stream_dtype)

    grid = (N_pad // tm_eff,)
    out = pl.pallas_call(
        _mlb_fusion_kernel,
        out_shape=jax.ShapeDtypeStruct((N_pad, dim_h), out_dtype),
        grid=grid,
        in_specs=[
            pl.BlockSpec((tm_eff, K_pad), lambda i: (i, 0)),      # packed rows
            pl.BlockSpec((K_pad, 2 * dim_h), lambda i: (0, 0)),   # packed W (resident)
        ],
        out_specs=pl.BlockSpec((tm_eff, dim_h), lambda i: (i, 0)),
        compiler_params=pltpu.CompilerParams(
            dimension_semantics=("parallel",)),   # shards grid over v7x's 2 TCs
    )(x, w)

    return out[:N].reshape(B, W, dim_h)


def _init_linear(key, dim_in, dim_out, dtype=jnp.float32):
    # PyTorch nn.Linear default init: U(-1/sqrt(in), 1/sqrt(in)) for W and b.
    kw, kb = jax.random.split(key)
    bound = 1.0 / (dim_in ** 0.5)
    # weight stored pre-transposed as (dim_in, dim_out) for the kernel
    w = jax.random.uniform(kw, (dim_in, dim_out), dtype, -bound, bound)
    b = jax.random.uniform(kb, (dim_out,), dtype, -bound, bound)
    return w, b


if __name__ == "__main__":
    # opt = {'dim_v': 32, 'dim_q': 24, 'dim_h': 64,
    #        'activation_v': 'tanh', 'activation_q': 'tanh'}
    B, W = 2, 8
    dim_v, dim_q, dim_h = 32, 24, 64

    key = jax.random.PRNGKey(0)
    k_v, k_q, k_wv, k_wq = jax.random.split(key, 4)

    input_v = jax.random.normal(k_v, (B, W, dim_v), jnp.float32)
    input_q = jax.random.normal(k_q, (B, W, dim_q), jnp.float32)
    w_v, b_v = _init_linear(k_wv, dim_v, dim_h)
    w_q, b_q = _init_linear(k_wq, dim_q, dim_h)

    # pure-JAX reference
    ref_v = jnp.tanh(input_v.reshape(B * W, dim_v) @ w_v + b_v)
    ref_q = jnp.tanh(input_q.reshape(B * W, dim_q) @ w_q + b_q)
    ref = (ref_v * ref_q).reshape(B, W, dim_h)

    # f32 streaming path (matches the PyTorch module numerics)
    out = mlb_fusion_2d(input_v, input_q, w_v, b_v, w_q, b_q)
    out = jax.block_until_ready(out)
    assert out.shape == (B, W, dim_h)
    assert jnp.allclose(out, ref, atol=1e-5, rtol=1e-5)

    # bf16 streaming path (halves HBM input traffic; f32 math in-kernel)
    out_bf16 = mlb_fusion_2d(input_v, input_q, w_v, b_v, w_q, b_q,
                             io_dtype=jnp.bfloat16)
    out_bf16 = jax.block_until_ready(out_bf16)
    assert jnp.allclose(out_bf16, ref, atol=5e-2, rtol=5e-2)

    print("KERNEL_OK")
</pallas_src>

<mosaic_0001>
module attributes {stable_mosaic.version = 11 : i64} {
  func.func @_mlb_fusion_kernel(%arg0: i32, %arg1: memref<16x64xf32, #tpu.memory_space<vmem>>, %arg2: memref<64x128xf32, #tpu.memory_space<vmem>>, %arg3: memref<16x64xf32, #tpu.memory_space<vmem>>) attributes {dimension_semantics = [#tpu.dimension_semantics<parallel>], iteration_bounds = array<i64: 1>, scalar_prefetch = 0 : i64, scratch_operands = 0 : i64, tpu.core_type = #tpu.core_type<tc>, window_params = [{transform_indices = @transform_0, window_bounds = array<i64: 16, 64>}, {pipeline_mode = #tpu.pipeline_mode<synchronous>, transform_indices = @transform_1, window_bounds = array<i64: 64, 128>}, {transform_indices = @transform_2, window_bounds = array<i64: 16, 64>}]} {
    %c0 = arith.constant 0 : index
    %c0_0 = arith.constant 0 : index
    %0 = vector.load %arg1[%c0, %c0_0] : memref<16x64xf32, #tpu.memory_space<vmem>>, vector<16x64xf32>
    %c0_1 = arith.constant 0 : index
    %c0_2 = arith.constant 0 : index
    %1 = vector.load %arg2[%c0_1, %c0_2] : memref<64x128xf32, #tpu.memory_space<vmem>>, vector<64x128xf32>
    %cst = arith.constant dense<0.000000e+00> : vector<16x128xf32>
    %2 = tpu.matmul %0, %1, %cst {dimension_numbers = #tpu.dot_dimension_numbers<[1], [0], [0], [1], [0, 0, 1, 1], [], []>} : vector<16x64xf32>, vector<64x128xf32>, vector<16x128xf32> -> vector<16x128xf32>
    %3 = math.tanh %2 : vector<16x128xf32>
    %c64_i32 = arith.constant 64 : i32
    %4 = tpu.dynamic_rotate %3 by %c64_i32 dim 1 : vector<16x128xf32>, i32 -> vector<16x128xf32>
    %5 = arith.mulf %3, %4 : vector<16x128xf32>
    %6 = vector.extract_strided_slice %5 {offsets = [0, 0], sizes = [16, 64], strides = [1, 1]} : vector<16x128xf32> to vector<16x64xf32>
    %c0_3 = arith.constant 0 : index
    %c0_4 = arith.constant 0 : index
    %7 = vector.load %arg3[%c0_3, %c0_4] : memref<16x64xf32, #tpu.memory_space<vmem>>, vector<16x64xf32>
    tpu.vector_store %arg3[%c0_3, %c0_4], %6 {strides = array<i32>} : memref<16x64xf32, #tpu.memory_space<vmem>>, vector<16x64xf32>,
    return
  }
  func.func @transform_0(%arg0: i32) -> (i32, i32) {
    %c0_i32 = arith.constant 0 : i32
    %c0_i32_0 = arith.constant 0 : i32
    return %arg0, %c0_i32 : i32, i32
  }
  func.func @transform_1(%arg0: i32) -> (i32, i32) {
    %c0_i32 = arith.constant 0 : i32
    %c0_i32_0 = arith.constant 0 : i32
    %c0_i32_1 = arith.constant 0 : i32
    return %c0_i32, %c0_i32_0 : i32, i32
  }
  func.func @transform_2(%arg0: i32) -> (i32, i32) {
    %c0_i32 = arith.constant 0 : i32
    %c0_i32_0 = arith.constant 0 : i32
    return %arg0, %c0_i32 : i32, i32
  }
}

</mosaic_0001>

<llo_original>
// kernel: tpu_custom_call.1
$region0: #{tpu_custom_call.1}
  #allocation0 [shape = 'u32[]', space=smem, size = 0x4, offset = 0x4, fixed_abs, tag = 'smem constant byte address 0x4 - core index']
  #allocation1 [shape = 'u32[144,128]{1,0:T(1,128)}', space=vmem, size = 0x12000, scoped, tag = 'internal scratch']
  %s0 = inlined_call_operand.hbm [shape: f32[16,64], index: 0, kind: input, shape index: {}]
  %s1 = inlined_call_operand.hbm [shape: f32[64,128], index: 1, kind: input, shape index: {}]
  %s2 = inlined_call_operand.hbm [shape: f32[16,64], index: 2, kind: output, shape index: {}]
  %s3 = sld [smem:[#allocation0]]
  $region26: #{tpu_custom_call.1} parent=0
    _
  %s5 = ssub.s32 1, %s3
  %s6 = scalar_select 0, %s5, %s3
  $region1: #{tpu_custom_call.1} parent=0
    #allocation2 [shape = 'u8[8192]{0}', space=vmem, size = 0x2000, scoped, tag = 'input window, operand 0, single buffered']
    #allocation3 [shape = 's32[1]{0}', space=sflag, size = 0x4, scoped, tag = 'scoped memory for tpu_custom_call.1']
    #allocation4 [shape = 's32[1]{0}', space=sflag, size = 0x4, scoped, tag = 'scoped memory for tpu_custom_call.1']
    #allocation5 [shape = 'u8[32768]{0}', space=vmem, size = 0x8000, scoped, tag = 'input window, operand 1, single buffered']
    #allocation6 [shape = 's32[1]{0}', space=sflag, size = 0x4, scoped, tag = 'scoped memory for tpu_custom_call.1']
    #allocation7 [shape = 'u8[8192]{0}', space=vmem, size = 0x2000, scoped, tag = 'output window, operand 0, single buffered']
    %7 = vsyncpa [#allocation3], 0
    %8 = vsyncpa [#allocation6], 0
    %9 = vsyncpa [#allocation4], 0
    // Predicated region
    $region2: #{tpu_custom_call.1} parent=1 // pred_check
      _
    $region3: #{tpu_custom_call.1} parent=1 // pred_check_branch
      %11 = sbr.rel (0) target = $region5
    $region4: #{tpu_custom_call.1} parent=1 // pred_region
      %s13 = ssub.s32 256, 256
      %14 = vsyncadd [#allocation3], %s13
      %s15 = sshll.u32 [#allocation2], 4
      %s16 = int_to_ptr.vmem [resolvable:$true] %s15
      %21 = dma.hbm_to_vmem [thread:$0]  %s0, 256, %s16, [#allocation3], 128, 128, 8
    $region5: #{tpu_custom_call.1} parent=1 // pred_fallthru
      _
    // Predicated region
    $region6: #{tpu_custom_call.1} parent=1 // pred_check
      _
    $region7: #{tpu_custom_call.1} parent=1 // pred_check_branch
      %23 = sbr.rel (0) target = $region9
    $region8: #{tpu_custom_call.1} parent=1 // pred_region
      %s25 = ssub.s32 1024, 1024
      %26 = vsyncadd [#allocation6], %s25
      %s27 = sshll.u32 [#allocation5], 4
      %s28 = int_to_ptr.vmem [resolvable:$true] %s27
      %33 = dma.hbm_to_vmem [thread:$0]  %s1, 1024, %s28, [#allocation6], 128, 128, 8
    $region9: #{tpu_custom_call.1} parent=1 // pred_fallthru
      _
    // Predicated region
    $region10: #{tpu_custom_call.1} parent=1 // pred_check
      _
    $region11: #{tpu_custom_call.1} parent=1 // pred_check_branch
      %35 = sbr.rel (0) target = $region13
    $region12: #{tpu_custom_call.1} parent=1 // pred_region
      %36 = dma.done [#allocation3], 256
    $region13: #{tpu_custom_call.1} parent=1 // pred_fallthru
      _
    // Predicated region
    $region14: #{tpu_custom_call.1} parent=1 // pred_check
      _
    $region15: #{tpu_custom_call.1} parent=1 // pred_check_branch
      %38 = sbr.rel (0) target = $region17
    $region16: #{tpu_custom_call.1} parent=1 // pred_region
      %39 = dma.done [#allocation6], 1024
    $region17: #{tpu_custom_call.1} parent=1 // pred_fallthru
      _
    %v40 = vld [vmem:[#allocation2] sm:$0xff]
    %v41 = vld [vmem:[#allocation2 + $0x8] sm:$0xff]
    %v42 = vld [vmem:[#allocation5] sm:$0xff]
    %v43 = vld [vmem:[#allocation5 + $0x8] sm:$0xff]
    %v44 = vld [vmem:[#allocation5 + $0x10] sm:$0xff]
    %v45 = vld [vmem:[#allocation5 + $0x18] sm:$0xff]
    %v46 = vld [vmem:[#allocation5 + $0x20] sm:$0xff]
    %v47 = vld [vmem:[#allocation5 + $0x28] sm:$0xff]
    %v48 = vld [vmem:[#allocation5 + $0x30] sm:$0xff]
    %v49 = vld [vmem:[#allocation5 + $0x38] sm:$0xff]
    %vm50 = vcmask 523264
    %v52 = vsel %vm50, %v40, 0
    %v55 = vsel %vm50, %v41, 0
    %57 = vmatprep.subr.mxu0 0.0
    %58 = vmatpush1.msra.mxu0 0.0
    %59 = vmatprep.subr.mxu0 0.0
    %60 = vmatpush1.msra.mxu0 0.0
    %61 = vmatprep.subr.mxu0 0.0
    %62 = vmatpush1.msra.mxu0 0.0
    %63 = vmatprep.subr.mxu0 0.0
    %64 = vmatpush1.msra.mxu0 0.0
    %65 = vmatprep.subr.mxu0 0.0
    %66 = vmatpush1.msra.mxu0 0.0
    %67 = vmatprep.subr.mxu0 0.0
    %68 = vmatpush1.msra.mxu0 0.0
    %69 = vmatprep.subr.mxu0 0.0
    %70 = vmatpush1.msra.mxu0 0.0
    %71 = vmatprep.subr.mxu0 0.0
    %72 = vmatpush1.msra.mxu0 0.0
    %73 = vmatprep.subr.mxu0 0.0
    %74 = vmatpush1.msra.mxu0 %v49
    %75 = vmatprep.subr.mxu0 0.0
    %76 = vmatpush1.msra.mxu0 %v48
    %77 = vmatprep.subr.mxu0 0.0
    %78 = vmatpush1.msra.mxu0 %v47
    %79 = vmatprep.subr.mxu0 0.0
    %80 = vmatpush1.msra.mxu0 %v46
    %81 = vmatprep.subr.mxu0 0.0
    %82 = vmatpush1.msra.mxu0 %v45
    %83 = vmatprep.subr.mxu0 0.0
    %84 = vmatpush1.msra.mxu0 %v44
    %85 = vmatprep.subr.mxu0 0.0
    %86 = vmatpush1.msra.mxu0 %v43
    %87 = vmatprep.subr.mxu0 0.0
    %88 = vmatpush1.msra.mxu0 %v42
    %89 = vmatprep.subr.mxu0 0.0
    %90 = vmatpush2.msra.mxu0 0.0
    %91 = vmatprep.subr.mxu0 0.0
    %92 = vmatpush2.msra.mxu0 0.0
    %93 = vmatprep.subr.mxu0 0.0
    %94 = vmatpush2.msra.mxu0 0.0
    %95 = vmatprep.subr.mxu0 0.0
    %96 = vmatpush2.msra.mxu0 0.0
    %97 = vmatprep.subr.mxu0 0.0
    %98 = vmatpush2.msra.mxu0 0.0
    %99 = vmatprep.subr.mxu0 0.0
    %100 = vmatpush2.msra.mxu0 0.0
    %101 = vmatprep.subr.mxu0 0.0
    %102 = vmatpush2.msra.mxu0 0.0
    %103 = vmatprep.subr.mxu0 0.0
    %104 = vmatpush2.msra.mxu0 0.0
    %105 = vmatprep.subr.mxu0 0.0
    %106 = vmatpush2.msra.mxu0 0.0
    %107 = vmatprep.subr.mxu0 0.0
    %108 = vmatpush2.msra.mxu0 0.0
    %109 = vmatprep.subr.mxu0 0.0
    %110 = vmatpush2.msra.mxu0 0.0
    %111 = vmatprep.subr.mxu0 0.0
    %112 = vmatpush2.msra.mxu0 0.0
    %113 = vmatprep.subr.mxu0 0.0
    %114 = vmatpush2.msra.mxu0 0.0
    %115 = vmatprep.subr.mxu0 0.0
    %116 = vmatpush2.msra.mxu0 0.0
    %117 = vmatprep.subr.mxu0 0.0
    %118 = vmatpush2.msra.mxu0 0.0
    %119 = vmatprep.subr.mxu0 0.0
    %120 = vmatpush2.msra.mxu0 0.0
    %121 = vmatprep.mubr.f32.mxu0 0.0
    %122 = vmatmul.mubr.f32.gmra.mxu0 %v52
    %v123 = vpop.f32.mrf.mxu0
    %v124 = vadd.f32 0.0, %v123
    %v125 = vpop.f32.mrf.mxu0
    %126 = vmatprep.mubr.f32.mxu0 0.0
    %127 = vmatmul.mubr.f32.gmra.mxu0 %v55
    %v128 = vpop.f32.mrf.mxu0
    %v129 = vadd.f32 0.0, %v128
    %v130 = vpop.f32.mrf.mxu0
    %131 = vdwg.mxu0
    %v132 = vtanh.pop %v124
    %v133 = vtanh.pop %v129
    %134 = vrot.lane.b32.xlu0 %v132, 64
    %v135 = vpop.permute.xlu0 %134
    %136 = vrot.lane.b32.xlu0 %v133, 64
    %v137 = vpop.permute.xlu0 %136
    %v138 = vmul.f32 %v132, %v135
    %v139 = vmul.f32 %v133, %v137
    %140 = vst.msk [vmem:[#allocation7] sm:$0xff] %vm50, %v138
    %141 = vst.msk [vmem:[#allocation7 + $0x8] sm:$0xff] %vm50, %v139
    // Predicated region
    $region18: #{tpu_custom_call.1} parent=1 // pred_check
      _
    $region19: #{tpu_custom_call.1} parent=1 // pred_check_branch
      %143 = sbr.rel (0) target = $region21
    $region20: #{tpu_custom_call.1} parent=1 // pred_region
      %s145 = ssub.s32 256, 256
      %146 = vsyncadd [#allocation4], %s145
      %s147 = sshll.u32 [#allocation7], 4
      %s148 = int_to_ptr.vmem [resolvable:$true] %s147
      %153 = dma.vmem_to_hbm [thread:$0]  %s148, 256, %s2, [#allocation4], 128, 128, 8
    $region21: #{tpu_custom_call.1} parent=1 // pred_fallthru
      _
    // Predicated region
    $region22: #{tpu_custom_call.1} parent=1 // pred_check
      _
    $region23: #{tpu_custom_call.1} parent=1 // pred_check_branch
      %155 = sbr.rel (0) target = $region25
    $region24: #{tpu_custom_call.1} parent=1 // pred_region
      %156 = dma.done [#allocation4], 256
    $region25: #{tpu_custom_call.1} parent=1 // pred_fallthru
      _
    %157 = vsyncpa [#allocation3], 1
    %158 = vsyncpa [#allocation6], 1
    %159 = vsyncpa [#allocation4], 1

</llo_original>
